<compile_context>
chip_gen: v5e
topology: v5e:2x2
jax: 0.10.0
libtpu: 0.0.40
codegen_flags: <defaults>
</compile_context>

<pallas_src>
import jax
import jax.numpy as jnp
from jax.experimental import pallas as pl
from jax.experimental.pallas import tpu as pltpu


_SQRT_2_OVER_PI = 0.7978845608028654  # sqrt(2/pi)


def _round_up(x, m):
    return (x + m - 1) // m * m


def _cdiv(a, b):
    return (a + b - 1) // b


# ----------------------------------------------------------------------------
# Kernels
# ----------------------------------------------------------------------------
def _ffn_partial(x_ref, w1_ref, b1_ref, w2_ref):
    """One (tm, tk) slice of hidden activations -> partial (tm, emb) output."""
    xv = x_ref[...].astype(w1_ref.dtype)                      # in-kernel cast (free filler)
    h = jnp.dot(xv, w1_ref[...], preferred_element_type=jnp.float32) + b1_ref[...]
    # GELU (tanh approx), rewritten via logistic:
    #   0.5*h*(1+tanh(z)) == h*sigmoid(2z),  z = c*h*(1 + 0.044715*h^2)
    h2 = h * h
    g = h * jax.nn.sigmoid(2.0 * _SQRT_2_OVER_PI * h * (1.0 + 0.044715 * h2))
    return jnp.dot(g.astype(w2_ref.dtype), w2_ref[...],
                   preferred_element_type=jnp.float32)


def _ffn_kernel_scratch(x_ref, w1_ref, b1_ref, w2_ref, b2_ref, o_ref, acc_ref):
    """Variant with an f32 VMEM accumulator (used when out dtype != f32)."""
    k = pl.program_id(1)
    part = _ffn_partial(x_ref, w1_ref, b1_ref, w2_ref)

    @pl.when(k == 0)
    def _():
        acc_ref[...] = part              # no separate zero-fill pass

    @pl.when(k != 0)
    def _():
        acc_ref[...] += part

    @pl.when(k == pl.num_programs(1) - 1)
    def _():
        o_ref[...] = (acc_ref[...] + b2_ref[...]).astype(o_ref.dtype)


def _ffn_kernel_f32out(x_ref, w1_ref, b1_ref, w2_ref, b2_ref, o_ref):
    """Variant for f32 outputs: accumulate directly into the resident output."""
    k = pl.program_id(1)
    part = _ffn_partial(x_ref, w1_ref, b1_ref, w2_ref)

    @pl.when(k == 0)
    def _():
        o_ref[...] = part

    @pl.when(k != 0)
    def _():
        o_ref[...] += part

    @pl.when(k == pl.num_programs(1) - 1)
    def _():
        o_ref[...] += b2_ref[...]


# ----------------------------------------------------------------------------
# Parameter preparation (hoisted out of the per-call path)
# ----------------------------------------------------------------------------
def prepare_ffn_params(w1, b1, w2, b2, *, tk=1024, compute_dtype=jnp.bfloat16):
    """Pad + cast the FFN weights once.

    w1: (emb, hid)  b1: (hid,)  w2: (hid, emb)  b2: (emb,)   -- (in, out) layout.
    The hidden dim is padded up to a multiple of tk so the k-grid is exact
    (padded columns produce GELU(0)=0 and contribute nothing).
    """
    emb, hid = w1.shape
    emb_p = _round_up(emb, 128)
    tk_eff = _round_up(min(tk, _round_up(hid, 128)), 128)
    hid_p = _round_up(hid, tk_eff)

    w1p = jnp.pad(w1, ((0, emb_p - emb), (0, hid_p - hid))).astype(compute_dtype)
    w2p = jnp.pad(w2, ((0, hid_p - hid), (0, emb_p - emb))).astype(compute_dtype)
    b1p = jnp.pad(b1, (0, hid_p - hid)).reshape(1, hid_p).astype(jnp.float32)
    b2p = jnp.pad(b2, (0, emb_p - emb)).reshape(1, emb_p).astype(jnp.float32)
    return dict(w1=w1p, b1=b1p, w2=w2p, b2=b2p, tk=tk_eff, emb=emb, hid=hid)


def _default_vmem_limit():
    # Generation-aware budget; conservative fallback works on v5e/v6e/v7x.
    try:
        info = pltpu.get_tpu_info()
        cap = getattr(info, "vmem_capacity_bytes", None)
        if cap:
            return int(min(100 << 20, int(cap * 0.85)))
    except Exception:
        pass
    return 56 << 20  # safe on v7x (64 MiB physical) and below v5e/v6e physical


# ----------------------------------------------------------------------------
# Forward pass
# ----------------------------------------------------------------------------
def apply_feed_forward(x, params, *, tm=512, vmem_limit_bytes=None):
    """Run the fused FFN kernel on x of shape (batch, seq, emb)."""
    batch, seq, emb = x.shape
    w1p, b1p, w2p, b2p = params["w1"], params["b1"], params["w2"], params["b2"]
    tk_eff = params["tk"]
    emb_p, hid_p = w1p.shape
    out_dtype = x.dtype
    compute_dtype = w1p.dtype
    M = batch * seq

    if vmem_limit_bytes is None:
        vmem_limit_bytes = _default_vmem_limit()

    xbytes = jnp.dtype(x.dtype).itemsize
    cbytes = jnp.dtype(compute_dtype).itemsize
    obytes = jnp.dtype(out_dtype).itemsize
    # Accumulate directly into the output when it's f32 (drops the scratch).
    use_scratch = out_dtype != jnp.float32

    # Row tile: multiple of 16 for bf16 sublane packing (8 is enough for f32).
    row_align = 8 if cbytes >= 4 else 16
    tm_eff = _round_up(min(tm, _round_up(M, row_align)), row_align)

    # Auto-shrink tm to fit the VMEM budget (double-buffered inputs/outputs).
    def _footprint(t):
        f = 2 * t * emb_p * xbytes          # x tile, double buffered
        f += 2 * t * emb_p * obytes         # out tile, double buffered
        if use_scratch:
            f += t * emb_p * 4              # f32 accumulator scratch
        f += 2 * emb_p * tk_eff * cbytes    # W1 slice, double buffered
        f += 2 * tk_eff * emb_p * cbytes    # W2 slice, double buffered
        f += 2 * (tk_eff + emb_p) * 4       # biases
        return f

    budget = int(vmem_limit_bytes * 0.85)
    while tm_eff > row_align and _footprint(tm_eff) > budget:
        tm_eff = max(row_align, _round_up(tm_eff // 2, row_align))

    # Even number of row tiles (when >1) so both v7x TensorCores stay busy.
    num_row_tiles = _cdiv(M, tm_eff)
    if num_row_tiles > 1 and num_row_tiles % 2 == 1:
        num_row_tiles += 1
    M_p = num_row_tiles * tm_eff

    x2d = jnp.pad(x.reshape(M, emb), ((0, M_p - M), (0, emb_p - emb)))

    grid = (num_row_tiles, hid_p // tk_eff)

    cost = pl.CostEstimate(
        flops=4 * M_p * emb_p * hid_p,                      # two matmuls
        transcendentals=M_p * hid_p,                        # one logistic/elem
        bytes_accessed=(x2d.size * xbytes
                        + num_row_tiles * (w1p.size + w2p.size) * cbytes  # re-streamed
                        + (b1p.size + b2p.size) * 4
                        + M_p * emb_p * obytes),
    )

    in_specs = [
        pl.BlockSpec((tm_eff, emb_p), lambda i, k: (i, 0)),   # x rows
        pl.BlockSpec((emb_p, tk_eff), lambda i, k: (0, k)),   # W1 k-slice
        pl.BlockSpec((1, tk_eff),     lambda i, k: (0, k)),   # b1 k-slice
        pl.BlockSpec((tk_eff, emb_p), lambda i, k: (k, 0)),   # W2 k-slice
        pl.BlockSpec((1, emb_p),      lambda i, k: (0, 0)),   # b2 (full)
    ]
    out_spec = pl.BlockSpec((tm_eff, emb_p), lambda i, k: (i, 0))

    if use_scratch:
        kernel = _ffn_kernel_scratch
        scratch_shapes = [pltpu.VMEM((tm_eff, emb_p), jnp.float32)]
    else:
        kernel = _ffn_kernel_f32out
        scratch_shapes = []

    out2d = pl.pallas_call(
        kernel,
        out_shape=jax.ShapeDtypeStruct((M_p, emb_p), out_dtype),
        grid_spec=pltpu.PrefetchScalarGridSpec(
            num_scalar_prefetch=0,
            grid=grid,
            in_specs=in_specs,
            out_specs=out_spec,
            scratch_shapes=scratch_shapes,
        ),
        compiler_params=pltpu.CompilerParams(
            dimension_semantics=("parallel", "arbitrary"),
            vmem_limit_bytes=int(vmem_limit_bytes),
        ),
        cost_estimate=cost,
    )(x2d, w1p, b1p, w2p, b2p)

    return out2d[:M, :emb].reshape(batch, seq, emb)


def feed_forward(x, w1, b1, w2, b2, *, tm=512, tk=1024,
                 compute_dtype=jnp.bfloat16, vmem_limit_bytes=None):
    """Convenience wrapper: prepare params + run.  For production, call
    `prepare_ffn_params` once at init and `apply_feed_forward` per step."""
    params = prepare_ffn_params(w1, b1, w2, b2, tk=tk, compute_dtype=compute_dtype)
    return apply_feed_forward(x, params, tm=tm, vmem_limit_bytes=vmem_limit_bytes)


# ----------------------------------------------------------------------------
# Reference + self-test
# ----------------------------------------------------------------------------
def _reference(x, w1, b1, w2, b2):
    h = x @ w1 + b1
    c = jnp.sqrt(jnp.float32(2.0 / jnp.pi))
    h = 0.5 * h * (1.0 + jnp.tanh(c * (h + 0.044715 * h ** 3)))
    return h @ w2 + b2


if __name__ == "__main__":
    # Small shapes consistent with the module: cfg['emb_dim'] = 32
    batch, seq, emb = 2, 8, 32
    hid = 4 * emb

    key = jax.random.PRNGKey(0)
    kx, kw1, kb1, kw2, kb2 = jax.random.split(key, 5)

    x = jax.random.normal(kx, (batch, seq, emb), dtype=jnp.float32)
    # Linear weights stored as (in, out)  (transposed vs torch's (out, in))
    w1 = jax.random.normal(kw1, (emb, hid), dtype=jnp.float32) * 0.02
    b1 = jax.random.normal(kb1, (hid,), dtype=jnp.float32) * 0.02
    w2 = jax.random.normal(kw2, (hid, emb), dtype=jnp.float32) * 0.02
    b2 = jax.random.normal(kb2, (emb,), dtype=jnp.float32) * 0.02

    ref = _reference(x, w1, b1, w2, b2)

    # Exact-precision path: f32 matmul inputs (f32-out kernel, no scratch).
    out_f32 = jax.block_until_ready(
        feed_forward(x, w1, b1, w2, b2, compute_dtype=jnp.float32))
    assert out_f32.shape == (batch, seq, emb)
    assert jnp.allclose(out_f32, ref, atol=1e-5, rtol=1e-5), "f32 mismatch vs reference"

    # Fast path (default): bf16 MXU inputs, f32 accumulation — looser tolerance.
    out_bf16 = jax.block_until_ready(feed_forward(x, w1, b1, w2, b2))
    assert out_bf16.shape == (batch, seq, emb)
    assert jnp.allclose(out_bf16, ref, atol=2e-2, rtol=2e-2), "bf16 mismatch vs reference"

    print("KERNEL_OK")
</pallas_src>

<mosaic_0001>
module attributes {stable_mosaic.version = 11 : i64} {
  func.func @_ffn_kernel_f32out(%arg0: i32, %arg1: i32, %arg2: memref<16x128xf32, #tpu.memory_space<vmem>>, %arg3: memref<128x128xf32, #tpu.memory_space<vmem>>, %arg4: memref<1x128xf32, #tpu.memory_space<vmem>>, %arg5: memref<128x128xf32, #tpu.memory_space<vmem>>, %arg6: memref<1x128xf32, #tpu.memory_space<vmem>>, %arg7: memref<16x128xf32, #tpu.memory_space<vmem>>) attributes {dimension_semantics = [#tpu.dimension_semantics<parallel>, #tpu.dimension_semantics<arbitrary>], iteration_bounds = array<i64: 1, 1>, scalar_prefetch = 0 : i64, scratch_operands = 0 : i64, tpu.core_type = #tpu.core_type<tc>, window_params = [{transform_indices = @transform_0, window_bounds = array<i64: 16, 128>}, {transform_indices = @transform_1, window_bounds = array<i64: 128, 128>}, {transform_indices = @transform_2, window_bounds = array<i64: 1, 128>}, {transform_indices = @transform_3, window_bounds = array<i64: 128, 128>}, {pipeline_mode = #tpu.pipeline_mode<synchronous>, transform_indices = @transform_4, window_bounds = array<i64: 1, 128>}, {transform_indices = @transform_5, window_bounds = array<i64: 16, 128>}]} {
    %c0 = arith.constant 0 : index
    %c0_0 = arith.constant 0 : index
    %0 = vector.load %arg2[%c0, %c0_0] : memref<16x128xf32, #tpu.memory_space<vmem>>, vector<16x128xf32>
    %c0_1 = arith.constant 0 : index
    %c0_2 = arith.constant 0 : index
    %1 = vector.load %arg3[%c0_1, %c0_2] : memref<128x128xf32, #tpu.memory_space<vmem>>, vector<128x128xf32>
    %cst = arith.constant dense<0.000000e+00> : vector<16x128xf32>
    %2 = tpu.matmul %0, %1, %cst {dimension_numbers = #tpu.dot_dimension_numbers<[1], [0], [0], [1], [0, 0, 1, 1], [], []>} : vector<16x128xf32>, vector<128x128xf32>, vector<16x128xf32> -> vector<16x128xf32>
    %c0_3 = arith.constant 0 : index
    %c0_4 = arith.constant 0 : index
    %3 = vector.load %arg4[%c0_3, %c0_4] : memref<1x128xf32, #tpu.memory_space<vmem>>, vector<1x128xf32>
    %4 = vector.broadcast %3 : vector<1x128xf32> to vector<16x128xf32>
    %5 = arith.addf %2, %4 : vector<16x128xf32>
    %6 = arith.mulf %5, %5 : vector<16x128xf32>
    %cst_5 = arith.constant 1.59576917 : f32
    %7 = vector.broadcast %cst_5 : f32 to vector<16x128xf32>
    %8 = arith.mulf %7, %5 : vector<16x128xf32>
    %cst_6 = arith.constant 4.471500e-02 : f32
    %9 = vector.broadcast %cst_6 : f32 to vector<16x128xf32>
    %10 = arith.mulf %9, %6 : vector<16x128xf32>
    %cst_7 = arith.constant 1.000000e+00 : f32
    %11 = vector.broadcast %cst_7 : f32 to vector<16x128xf32>
    %12 = arith.addf %11, %10 : vector<16x128xf32>
    %13 = arith.mulf %8, %12 : vector<16x128xf32>
    %14 = arith.negf %13 : vector<16x128xf32>
    %15 = math.exp %14 : vector<16x128xf32>
    %cst_8 = arith.constant 1.000000e+00 : f32
    %16 = vector.broadcast %cst_8 : f32 to vector<16x128xf32>
    %17 = arith.addf %16, %15 : vector<16x128xf32>
    %18 = arith.divf %16, %17 : vector<16x128xf32>
    %19 = arith.mulf %5, %18 : vector<16x128xf32>
    %c0_9 = arith.constant 0 : index
    %c0_10 = arith.constant 0 : index
    %20 = vector.load %arg5[%c0_9, %c0_10] : memref<128x128xf32, #tpu.memory_space<vmem>>, vector<128x128xf32>
    %cst_11 = arith.constant dense<0.000000e+00> : vector<16x128xf32>
    %21 = tpu.matmul %19, %20, %cst_11 {dimension_numbers = #tpu.dot_dimension_numbers<[1], [0], [0], [1], [0, 0, 1, 1], [], []>} : vector<16x128xf32>, vector<128x128xf32>, vector<16x128xf32> -> vector<16x128xf32>
    %c0_i32 = arith.constant 0 : i32
    %22 = arith.cmpi eq, %arg1, %c0_i32 : i32
    %23 = arith.extui %22 : i1 to i32
    %c0_i32_12 = arith.constant 0 : i32
    %24 = arith.cmpi ne, %23, %c0_i32_12 : i32
    scf.if %24 {
      %c0_17 = arith.constant 0 : index
      %c0_18 = arith.constant 0 : index
      %31 = vector.load %arg7[%c0_17, %c0_18] : memref<16x128xf32, #tpu.memory_space<vmem>>, vector<16x128xf32>
      tpu.vector_store %arg7[%c0_17, %c0_18], %21 {strides = array<i32>} : memref<16x128xf32, #tpu.memory_space<vmem>>, vector<16x128xf32>,
    } else {
    }
    %c0_i32_13 = arith.constant 0 : i32
    %25 = arith.cmpi ne, %arg1, %c0_i32_13 : i32
    %26 = arith.extui %25 : i1 to i32
    %c0_i32_14 = arith.constant 0 : i32
    %27 = arith.cmpi ne, %26, %c0_i32_14 : i32
    scf.if %27 {
      %c0_17 = arith.constant 0 : index
      %c0_18 = arith.constant 0 : index
      %31 = vector.load %arg7[%c0_17, %c0_18] : memref<16x128xf32, #tpu.memory_space<vmem>>, vector<16x128xf32>
      %32 = arith.addf %31, %21 : vector<16x128xf32>
      %c0_19 = arith.constant 0 : index
      %c0_20 = arith.constant 0 : index
      %33 = vector.load %arg7[%c0_19, %c0_20] : memref<16x128xf32, #tpu.memory_space<vmem>>, vector<16x128xf32>
      tpu.vector_store %arg7[%c0_19, %c0_20], %32 {strides = array<i32>} : memref<16x128xf32, #tpu.memory_space<vmem>>, vector<16x128xf32>,
    } else {
    }
    %c0_i32_15 = arith.constant 0 : i32
    %28 = arith.cmpi eq, %arg1, %c0_i32_15 : i32
    %29 = arith.extui %28 : i1 to i32
    %c0_i32_16 = arith.constant 0 : i32
    %30 = arith.cmpi ne, %29, %c0_i32_16 : i32
    scf.if %30 {
      %c0_17 = arith.constant 0 : index
      %c0_18 = arith.constant 0 : index
      %31 = vector.load %arg7[%c0_17, %c0_18] : memref<16x128xf32, #tpu.memory_space<vmem>>, vector<16x128xf32>
      %c0_19 = arith.constant 0 : index
      %c0_20 = arith.constant 0 : index
      %32 = vector.load %arg6[%c0_19, %c0_20] : memref<1x128xf32, #tpu.memory_space<vmem>>, vector<1x128xf32>
      %33 = vector.broadcast %32 : vector<1x128xf32> to vector<16x128xf32>
      %34 = arith.addf %31, %33 : vector<16x128xf32>
      %c0_21 = arith.constant 0 : index
      %c0_22 = arith.constant 0 : index
      %35 = vector.load %arg7[%c0_21, %c0_22] : memref<16x128xf32, #tpu.memory_space<vmem>>, vector<16x128xf32>
      tpu.vector_store %arg7[%c0_21, %c0_22], %34 {strides = array<i32>} : memref<16x128xf32, #tpu.memory_space<vmem>>, vector<16x128xf32>,
    } else {
    }
    return
  }
  func.func @transform_0(%arg0: i32, %arg1: i32) -> (i32, i32) {
    %c0_i32 = arith.constant 0 : i32
    %c0_i32_0 = arith.constant 0 : i32
    return %arg0, %c0_i32 : i32, i32
  }
  func.func @transform_1(%arg0: i32, %arg1: i32) -> (i32, i32) {
    %c0_i32 = arith.constant 0 : i32
    %c0_i32_0 = arith.constant 0 : i32
    return %c0_i32, %arg1 : i32, i32
  }
  func.func @transform_2(%arg0: i32, %arg1: i32) -> (i32, i32) {
    %c0_i32 = arith.constant 0 : i32
    %c0_i32_0 = arith.constant 0 : i32
    return %c0_i32, %arg1 : i32, i32
  }
  func.func @transform_3(%arg0: i32, %arg1: i32) -> (i32, i32) {
    %c0_i32 = arith.constant 0 : i32
    %c0_i32_0 = arith.constant 0 : i32
    return %arg1, %c0_i32 : i32, i32
  }
  func.func @transform_4(%arg0: i32, %arg1: i32) -> (i32, i32) {
    %c0_i32 = arith.constant 0 : i32
    %c0_i32_0 = arith.constant 0 : i32
    %c0_i32_1 = arith.constant 0 : i32
    return %c0_i32, %c0_i32_0 : i32, i32
  }
  func.func @transform_5(%arg0: i32, %arg1: i32) -> (i32, i32) {
    %c0_i32 = arith.constant 0 : i32
    %c0_i32_0 = arith.constant 0 : i32
    return %arg0, %c0_i32 : i32, i32
  }
}

</mosaic_0001>

<llo_original>
// kernel: tpu_custom_call.1
$region0: #{tpu_custom_call.1}
  #allocation0 [shape = 'u32[]', space=smem, size = 0x4, offset = 0x4, fixed_abs, tag = 'smem constant byte address 0x4 - core index']
  #allocation1 [shape = 'u32[72,128]{1,0:T(1,128)}', space=vmem, size = 0x9000, scoped, tag = 'internal scratch']
  %s0 = inlined_call_operand.hbm [shape: f32[16,128], index: 0, kind: input, shape index: {}]
  %s1 = inlined_call_operand.hbm [shape: f32[128,128], index: 1, kind: input, shape index: {}]
  %s2 = inlined_call_operand.vmem [shape: f32[1,128], index: 2, kind: input, shape index: {}]
  %s3 = inlined_call_operand.hbm [shape: f32[128,128], index: 3, kind: input, shape index: {}]
  %s4 = inlined_call_operand.vmem [shape: f32[1,128], index: 4, kind: input, shape index: {}]
  %s5 = inlined_call_operand.hbm [shape: f32[16,128], index: 5, kind: output, shape index: {}]
  %s6 = sld [smem:[#allocation0]]
  $region54: #{tpu_custom_call.1} parent=0
    _
  %s8 = ssub.s32 1, %s6
  %s9 = scalar_select 0, %s8, %s6
  $region1: #{tpu_custom_call.1} parent=0
    #allocation2 [shape = 'u8[8192]{0}', space=vmem, size = 0x2000, scoped, tag = 'input window, operand 0, single buffered']
    #allocation3 [shape = 's32[1]{0}', space=sflag, size = 0x4, scoped, tag = 'scoped memory for tpu_custom_call.1']
    #allocation4 [shape = 's32[1]{0}', space=sflag, size = 0x4, scoped, tag = 'scoped memory for tpu_custom_call.1']
    #allocation5 [shape = 'u8[65536]{0}', space=vmem, size = 0x10000, scoped, tag = 'input window, operand 1, single buffered']
    #allocation6 [shape = 's32[1]{0}', space=sflag, size = 0x4, scoped, tag = 'scoped memory for tpu_custom_call.1']
    #allocation7 [shape = 'u8[65536]{0}', space=vmem, size = 0x10000, scoped, tag = 'input window, operand 3, single buffered']
    #allocation8 [shape = 'u8[8192]{0}', space=vmem, size = 0x2000, scoped, tag = 'output window, operand 0, single buffered']
    %10 = vsyncpa [#allocation3], 0
    %11 = vsyncpa [#allocation6], 0
    %12 = vsyncpa [#allocation4], 0
    // Predicated region
    $region2: #{tpu_custom_call.1} parent=1 // pred_check
      _
    $region3: #{tpu_custom_call.1} parent=1 // pred_check_branch
      %14 = sbr.rel (0) target = $region5
    $region4: #{tpu_custom_call.1} parent=1 // pred_region
      %16 = vsyncadd [#allocation3], 0
      %s17 = sshll.u32 %s0, 4
      %s18 = int_to_ptr.hbm [resolvable:$true] %s17
      %s19 = sshll.u32 [#allocation2], 4
      %s20 = int_to_ptr.vmem [resolvable:$true] %s19
      %25 = dma.hbm_to_vmem [thread:$0]  %s18, 256, %s20, [#allocation3], 128, 128, 8
    $region5: #{tpu_custom_call.1} parent=1 // pred_fallthru
      _
    // Predicated region
    $region6: #{tpu_custom_call.1} parent=1 // pred_check
      _
    $region7: #{tpu_custom_call.1} parent=1 // pred_check_branch
      %27 = sbr.rel (0) target = $region9
    $region8: #{tpu_custom_call.1} parent=1 // pred_region
      %29 = vsyncadd [#allocation6], 0
      %s30 = sshll.u32 %s1, 4
      %s31 = int_to_ptr.hbm [resolvable:$true] %s30
      %s32 = sshll.u32 [#allocation5], 4
      %s33 = int_to_ptr.vmem [resolvable:$true] %s32
      %38 = dma.hbm_to_vmem [thread:$0]  %s31, 2048, %s33, [#allocation6], 128, 128, 8
    $region9: #{tpu_custom_call.1} parent=1 // pred_fallthru
      _
    // Predicated region
    $region10: #{tpu_custom_call.1} parent=1 // pred_check
      _
    $region11: #{tpu_custom_call.1} parent=1 // pred_check_branch
      %40 = sbr.rel (0) target = $region13
    $region12: #{tpu_custom_call.1} parent=1 // pred_region
      _
    $region13: #{tpu_custom_call.1} parent=1 // pred_fallthru
      _
    // Predicated region
    $region14: #{tpu_custom_call.1} parent=1 // pred_check
      _
    $region15: #{tpu_custom_call.1} parent=1 // pred_check_branch
      %42 = sbr.rel (0) target = $region17
    $region16: #{tpu_custom_call.1} parent=1 // pred_region
      %44 = vsyncadd [#allocation6], 0
      %s45 = sshll.u32 %s3, 4
      %s46 = int_to_ptr.hbm [resolvable:$true] %s45
      %s47 = sshll.u32 [#allocation7], 4
      %s48 = int_to_ptr.vmem [resolvable:$true] %s47
      %53 = dma.hbm_to_vmem [thread:$0]  %s46, 2048, %s48, [#allocation6], 128, 128, 8
    $region17: #{tpu_custom_call.1} parent=1 // pred_fallthru
      _
    // Predicated region
    $region18: #{tpu_custom_call.1} parent=1 // pred_check
      _
    $region19: #{tpu_custom_call.1} parent=1 // pred_check_branch
      %55 = sbr.rel (0) target = $region21
    $region20: #{tpu_custom_call.1} parent=1 // pred_region
      _
    $region21: #{tpu_custom_call.1} parent=1 // pred_fallthru
      _
    // Predicated region
    $region22: #{tpu_custom_call.1} parent=1 // pred_check
      _
    $region23: #{tpu_custom_call.1} parent=1 // pred_check_branch
      %57 = sbr.rel (0) target = $region25
    $region24: #{tpu_custom_call.1} parent=1 // pred_region
      %59 = dma.done [#allocation3], 256
    $region25: #{tpu_custom_call.1} parent=1 // pred_fallthru
      _
    // Predicated region
    $region26: #{tpu_custom_call.1} parent=1 // pred_check
      _
    $region27: #{tpu_custom_call.1} parent=1 // pred_check_branch
      %61 = sbr.rel (0) target = $region29
    $region28: #{tpu_custom_call.1} parent=1 // pred_region
      %63 = dma.done [#allocation6], 2048
    $region29: #{tpu_custom_call.1} parent=1 // pred_fallthru
      _
    // Predicated region
    $region30: #{tpu_custom_call.1} parent=1 // pred_check
      _
    $region31: #{tpu_custom_call.1} parent=1 // pred_check_branch
      %65 = sbr.rel (0) target = $region33
    $region32: #{tpu_custom_call.1} parent=1 // pred_region
      %67 = dma.done [#allocation6], 2048
    $region33: #{tpu_custom_call.1} parent=1 // pred_fallthru
      _
    %v68 = vld [vmem:[#allocation2] sm:$0xff]
    %v69 = vld [vmem:[#allocation2 + $0x8] sm:$0xff]
    %v70 = vld [vmem:[#allocation5] sm:$0xff]
    %v71 = vld [vmem:[#allocation5 + $0x8] sm:$0xff]
    %v72 = vld [vmem:[#allocation5 + $0x10] sm:$0xff]
    %v73 = vld [vmem:[#allocation5 + $0x18] sm:$0xff]
    %v74 = vld [vmem:[#allocation5 + $0x20] sm:$0xff]
    %v75 = vld [vmem:[#allocation5 + $0x28] sm:$0xff]
    %v76 = vld [vmem:[#allocation5 + $0x30] sm:$0xff]
    %v77 = vld [vmem:[#allocation5 + $0x38] sm:$0xff]
    %v78 = vld [vmem:[#allocation5 + $0x40] sm:$0xff]
    %v79 = vld [vmem:[#allocation5 + $0x48] sm:$0xff]
    %v80 = vld [vmem:[#allocation5 + $0x50] sm:$0xff]
    %v81 = vld [vmem:[#allocation5 + $0x58] sm:$0xff]
    %v82 = vld [vmem:[#allocation5 + $0x60] sm:$0xff]
    %v83 = vld [vmem:[#allocation5 + $0x68] sm:$0xff]
    %v84 = vld [vmem:[#allocation5 + $0x70] sm:$0xff]
    %v85 = vld [vmem:[#allocation5 + $0x78] sm:$0xff]
    %v86 = vld [vmem:[%s2] sm:$0x1]
    %v88 = vperm.slane %v86, 0
    %90 = vmatpush.msra.mxu0 %v85
    %91 = vmatpush.msra.mxu0 %v84
    %92 = vmatpush.msra.mxu0 %v83
    %93 = vmatpush.msra.mxu0 %v82
    %94 = vmatpush.msra.mxu0 %v81
    %95 = vmatpush.msra.mxu0 %v80
    %96 = vmatpush.msra.mxu0 %v79
    %97 = vmatpush.msra.mxu0 %v78
    %98 = vmatpush.msra.mxu0 %v77
    %99 = vmatpush.msra.mxu0 %v76
    %100 = vmatpush.msra.mxu0 %v75
    %101 = vmatpush.msra.mxu0 %v74
    %102 = vmatpush.msra.mxu0 %v73
    %103 = vmatpush.msra.mxu0 %v72
    %104 = vmatpush.msra.mxu0 %v71
    %105 = vmatpush.msra.mxu0 %v70
    %106 = vmatmul.f32.gmra.mxu0 %v68
    %v107 = vpop.f32.mrf.mxu0
    %v108 = vadd.f32 %v88, %v107
    %109 = vmatmul.f32.gmra.mxu0 %v69
    %v110 = vpop.f32.mrf.mxu0
    %v111 = vadd.f32 %v88, %v110
    %112 = vdwg.mxu0
    %v113 = vmul.f32 %v108, %v108
    %v114 = vmul.f32 %v111, %v111
    %v115 = vmul.f32 %v108, 1.5957692
    %v116 = vmul.f32 %v111, 1.5957692
    %v117 = vmul.f32 %v113, 0.044715
    %v118 = vmul.f32 %v114, 0.044715
    %v119 = vadd.f32 %v117, 1.0
    %v120 = vadd.f32 %v118, 1.0
    %v121 = vmul.f32 %v115, %v119
    %v122 = vmul.f32 %v116, %v120
    %v123 = vxor.u32 %v121, 2147483648
    %v124 = vxor.u32 %v122, 2147483648
    %v125 = vmul.f32 %v123, 1.442695
    %v126 = vpow.pop %v125
    %v127 = vmul.f32 %v124, 1.442695
    %v128 = vpow.pop %v127
    %v129 = vadd.f32 %v126, 1.0
    %v130 = vadd.f32 %v128, 1.0
    %v131 = vrcp.pop %v129
    %v132 = vmul.f32 %v129, %v131
    %v133 = vsub.f32 1.0, %v132
    %v134 = vmul.f32 %v131, %v133
    %v135 = vadd.f32 %v131, %v134
    %vm136 = vweird.f32 %v129
    %vm137 = vweird.f32 %v131
    %vm138 = vmor %vm136, %vm137
    %v139 = vsel %vm138, %v131, %v135
    %v140 = vand.u32 2147483647, %v129
    %vm141 = vcmp.eq.f32.partialorder %v140, 8.507059e+37
    %v142 = vand.u32 %v129, 2147483648
    %v143 = vor.u32 1.1754944e-38, %v142
    %v144 = vsel %vm141, %v143, %v139
    %v145 = vmul.f32 1.0, %v144
    %v146 = vrcp.pop %v130
    %v147 = vmul.f32 %v130, %v146
    %v148 = vsub.f32 1.0, %v147
    %v149 = vmul.f32 %v146, %v148
    %v150 = vadd.f32 %v146, %v149
    %vm151 = vweird.f32 %v130
    %vm152 = vweird.f32 %v146
    %vm153 = vmor %vm151, %vm152
    %v154 = vsel %vm153, %v146, %v150
    %v155 = vand.u32 2147483647, %v130
    %vm156 = vcmp.eq.f32.partialorder %v155, 8.507059e+37
    %v157 = vand.u32 %v130, 2147483648
    %v158 = vor.u32 1.1754944e-38, %v157
    %v159 = vsel %vm156, %v158, %v154
    %v160 = vmul.f32 1.0, %v159
    %v161 = vmul.f32 %v108, %v145
    %v162 = vmul.f32 %v111, %v160
    %v163 = vld [vmem:[#allocation7] sm:$0xff]
    %v164 = vld [vmem:[#allocation7 + $0x8] sm:$0xff]
    %v165 = vld [vmem:[#allocation7 + $0x10] sm:$0xff]
    %v166 = vld [vmem:[#allocation7 + $0x18] sm:$0xff]
    %v167 = vld [vmem:[#allocation7 + $0x20] sm:$0xff]
    %v168 = vld [vmem:[#allocation7 + $0x28] sm:$0xff]
    %v169 = vld [vmem:[#allocation7 + $0x30] sm:$0xff]
    %v170 = vld [vmem:[#allocation7 + $0x38] sm:$0xff]
    %v171 = vld [vmem:[#allocation7 + $0x40] sm:$0xff]
    %v172 = vld [vmem:[#allocation7 + $0x48] sm:$0xff]
    %v173 = vld [vmem:[#allocation7 + $0x50] sm:$0xff]
    %v174 = vld [vmem:[#allocation7 + $0x58] sm:$0xff]
    %v175 = vld [vmem:[#allocation7 + $0x60] sm:$0xff]
    %v176 = vld [vmem:[#allocation7 + $0x68] sm:$0xff]
    %v177 = vld [vmem:[#allocation7 + $0x70] sm:$0xff]
    %v178 = vld [vmem:[#allocation7 + $0x78] sm:$0xff]
    %179 = vmatpush.msra.mxu0 %v178
    %180 = vmatpush.msra.mxu0 %v177
    %181 = vmatpush.msra.mxu0 %v176
    %182 = vmatpush.msra.mxu0 %v175
    %183 = vmatpush.msra.mxu0 %v174
    %184 = vmatpush.msra.mxu0 %v173
    %185 = vmatpush.msra.mxu0 %v172
    %186 = vmatpush.msra.mxu0 %v171
    %187 = vmatpush.msra.mxu0 %v170
    %188 = vmatpush.msra.mxu0 %v169
    %189 = vmatpush.msra.mxu0 %v168
    %190 = vmatpush.msra.mxu0 %v167
    %191 = vmatpush.msra.mxu0 %v166
    %192 = vmatpush.msra.mxu0 %v165
    %193 = vmatpush.msra.mxu0 %v164
    %194 = vmatpush.msra.mxu0 %v163
    %195 = vmatmul.f32.gmra.mxu0 %v161
    %v196 = vpop.f32.mrf.mxu0
    %v197 = vadd.f32 0.0, %v196
    %198 = vmatmul.f32.gmra.mxu0 %v162
    %v199 = vpop.f32.mrf.mxu0
    %v200 = vadd.f32 0.0, %v199
    %201 = vdwg.mxu0
    %p202 = scmp.eq.s32.totalorder 0, 0
    // Predicated region
    $region34: #{tpu_custom_call.1} parent=1 // pred_check
      %p203 = pneg %p202
    $region35: #{tpu_custom_call.1} parent=1 // pred_check_branch
      %205 = sbr.rel (%p203) target = $region37
    $region36: #{tpu_custom_call.1} parent=1 // pred_region
      %206 = vst [vmem:[#allocation8] sm:$0xff] %v197
      %207 = vst [vmem:[#allocation8 + $0x8] sm:$0xff] %v200
    $region37: #{tpu_custom_call.1} parent=1 // pred_fallthru
      _
    %p208 = scmp.ne.s32.totalorder 0, 0
    // Predicated region
    $region38: #{tpu_custom_call.1} parent=1 // pred_check
      %p209 = pneg %p208
    $region39: #{tpu_custom_call.1} parent=1 // pred_check_branch
      %211 = sbr.rel (%p209) target = $region41
    $region40: #{tpu_custom_call.1} parent=1 // pred_region
      %v212 = vld [vmem:[#allocation8] sm:$0xff]
      %v213 = vld [vmem:[#allocation8 + $0x8] sm:$0xff]
      %v214 = vadd.f32 %v212, %v197
      %v215 = vadd.f32 %v213, %v200
      %216 = vst [vmem:[#allocation8] sm:$0xff] %v214
      %217 = vst [vmem:[#allocation8 + $0x8] sm:$0xff] %v215
    $region41: #{tpu_custom_call.1} parent=1 // pred_fallthru
      _
    // Predicated region
    $region42: #{tpu_custom_call.1} parent=1 // pred_check
      %p218 = pneg %p202
    $region43: #{tpu_custom_call.1} parent=1 // pred_check_branch
      %220 = sbr.rel (%p218) target = $region45
    $region44: #{tpu_custom_call.1} parent=1 // pred_region
      %v221 = vld [vmem:[#allocation8] sm:$0xff]
      %v222 = vld [vmem:[#allocation8 + $0x8] sm:$0xff]
      %v223 = vld [vmem:[%s4] sm:$0x1]
      %v225 = vperm.slane %v223, 0
      %v227 = vadd.f32 %v221, %v225
      %v228 = vadd.f32 %v222, %v225
      %229 = vst [vmem:[#allocation8] sm:$0xff] %v227
      %230 = vst [vmem:[#allocation8 + $0x8] sm:$0xff] %v228
    $region45: #{tpu_custom_call.1} parent=1 // pred_fallthru
      _
    // Predicated region
    $region46: #{tpu_custom_call.1} parent=1 // pred_check
      _
    $region47: #{tpu_custom_call.1} parent=1 // pred_check_branch
      %232 = sbr.rel (0) target = $region49
    $region48: #{tpu_custom_call.1} parent=1 // pred_region
      %234 = vsyncadd [#allocation4], 0
      %s235 = sshll.u32 [#allocation8], 4
      %s236 = int_to_ptr.vmem [resolvable:$true] %s235
      %s237 = sshll.u32 %s5, 4
      %s238 = int_to_ptr.hbm [resolvable:$true] %s237
      %243 = dma.vmem_to_hbm [thread:$0]  %s236, 256, %s238, [#allocation4], 128, 128, 8
    $region49: #{tpu_custom_call.1} parent=1 // pred_fallthru
      _
    // Predicated region
    $region50: #{tpu_custom_call.1} parent=1 // pred_check
      _
    $region51: #{tpu_custom_call.1} parent=1 // pred_check_branch
      %245 = sbr.rel (0) target = $region53
    $region52: #{tpu_custom_call.1} parent=1 // pred_region
      %247 = dma.done [#allocation4], 256
    $region53: #{tpu_custom_call.1} parent=1 // pred_fallthru
      _
    %248 = vsyncpa [#allocation3], 1
    %249 = vsyncpa [#allocation6], 1
    %250 = vsyncpa [#allocation4], 1

</llo_original>
